<compile_context>
chip_gen: v7x
topology: tpu7x:2x2x1
jax: 0.10.0
libtpu: 0.0.40
codegen_flags: <defaults>
</compile_context>

<pallas_src>
import functools

import jax
import jax.numpy as jnp
from jax.experimental import pallas as pl
from jax.experimental.pallas import tpu as pltpu

LANES = 128
TM_MAX = 2048          # max rows per grid step (2048*128*4B = 1 MiB per input tile)
ROW_ALIGN = 8          # keep row count a multiple of 8 so TM is always 8-aligned


def _bce_sum_kernel(x_ref, y_ref, out_ref, acc_ref, *, tm, n_valid, inv_n):
    i = pl.program_id(0)

    @pl.when(i == 0)
    def _():
        acc_ref[...] = jnp.zeros_like(acc_ref)

    x = x_ref[...].astype(jnp.float32)
    y = y_ref[...].astype(jnp.float32)

    # Numerically-stable BCE with logits: max(x,0) - x*y + log(1 + exp(-|x|))
    elem = jnp.maximum(x, 0.0) - x * y + jnp.log1p(jnp.exp(-jnp.abs(x)))

    # Mask out the ragged tail / any Pallas-padded rows of a partial last block.
    rows = jax.lax.broadcasted_iota(jnp.int32, (tm, LANES), 0)
    lanes = jax.lax.broadcasted_iota(jnp.int32, (tm, LANES), 1)
    gidx = (i * tm + rows) * LANES + lanes
    elem = jnp.where(gidx < n_valid, elem, 0.0)

    # vreg-shaped partial-sum accumulator: only VPU adds in the hot loop.
    acc_ref[...] += jnp.sum(elem.reshape(tm // 8, 8, LANES), axis=0)

    @pl.when(i == pl.num_programs(0) - 1)
    def _():
        col = jnp.sum(acc_ref[...], axis=0, keepdims=True)          # (1, 128)
        out_ref[...] = jnp.sum(col, axis=1, keepdims=True) * inv_n  # (1, 1)


def _bce_with_logits_mean(pred, target):
    """Mean BCE-with-logits over all elements via a Pallas reduction kernel."""
    n_valid = pred.size
    xf = jnp.ravel(pred)        # native dtype, no wrapper up-cast
    yf = jnp.ravel(target)      # native dtype (e.g. bf16 mask)

    base = ROW_ALIGN * LANES    # 1024
    padded = pl.cdiv(n_valid, base) * base
    if padded != n_valid:
        # Only triggered when numel % 1024 != 0; pad values are masked in-kernel.
        xf = jnp.pad(xf, (0, padded - n_valid))
        yf = jnp.pad(yf, (0, padded - n_valid))

    m_rows = padded // LANES            # multiple of 8
    tm = min(TM_MAX, m_rows)            # multiple of 8, never larger than the slab
    grid = (pl.cdiv(m_rows, tm),)

    x2 = xf.reshape(m_rows, LANES)
    y2 = yf.reshape(m_rows, LANES)

    kernel = functools.partial(
        _bce_sum_kernel, tm=tm, n_valid=n_valid, inv_n=1.0 / float(n_valid)
    )

    out = pl.pallas_call(
        kernel,
        out_shape=jax.ShapeDtypeStruct((1, 1), jnp.float32),
        grid_spec=pltpu.PrefetchScalarGridSpec(
            num_scalar_prefetch=0,
            grid=grid,
            in_specs=[
                pl.BlockSpec((tm, LANES), lambda i: (i, 0)),
                pl.BlockSpec((tm, LANES), lambda i: (i, 0)),
            ],
            out_specs=pl.BlockSpec((1, 1), lambda i: (0, 0)),
            scratch_shapes=[pltpu.VMEM((8, LANES), jnp.float32)],
        ),
        compiler_params=pltpu.CompilerParams(
            dimension_semantics=("arbitrary",)
        ),
    )(x2, y2)
    return out[0, 0]


def segmentation_loss(pred_seg_logits, target_segs, loss_type="bce_with_logits"):
    """JAX/Pallas port of SegmentationLoss.forward (bce_with_logits path)."""
    if isinstance(pred_seg_logits, (list, tuple)):
        pred_seg_logits = jnp.concatenate(pred_seg_logits, axis=0)
        target_segs = jnp.concatenate(target_segs, axis=0)

    # NCHW: resize target spatially if it doesn't match the prediction.
    if target_segs.shape[2] != pred_seg_logits.shape[2]:
        n, c = target_segs.shape[0], target_segs.shape[1]
        h, w = pred_seg_logits.shape[2], pred_seg_logits.shape[3]
        # bilinear, align_corners=False (half-pixel) semantics, like F.interpolate
        target_segs = jax.image.resize(
            target_segs, (n, c, h, w), method="bilinear"
        )

    if loss_type == "bce_with_logits":
        return _bce_with_logits_mean(pred_seg_logits, target_segs)
    # TODO(synk): 'dice' loss path not selected by the default __init__; only bce_with_logits implemented.
    raise NotImplementedError(loss_type)


if __name__ == "__main__":
    key = jax.random.PRNGKey(0)
    k1, k2 = jax.random.split(key)

    # Small NCHW shapes consistent with the module's forward.
    pred = jax.random.normal(k1, (2, 4, 16, 16), dtype=jnp.float32)
    # 0/1 mask target passed as bf16 (kernel up-casts in VMEM; halves HBM read).
    target = (jax.random.uniform(k2, (2, 4, 16, 16)) > 0.5).astype(jnp.bfloat16)

    loss = segmentation_loss(pred, target)
    loss = jax.block_until_ready(loss)

    # Reference check in plain JAX (stable BCE-with-logits mean).
    tgt_f32 = target.astype(jnp.float32)
    ref = jnp.mean(
        jnp.maximum(pred, 0.0)
        - pred * tgt_f32
        + jnp.log1p(jnp.exp(-jnp.abs(pred)))
    )
    assert jnp.allclose(loss, ref, atol=1e-5, rtol=1e-5), (loss, ref)

    print("KERNEL_OK")
</pallas_src>

<mosaic_0001>
module attributes {stable_mosaic.version = 11 : i64} {
  func.func @_bce_sum_kernel(%arg0: i32, %arg1: memref<16x128xf32, #tpu.memory_space<vmem>>, %arg2: memref<16x128xbf16, #tpu.memory_space<vmem>>, %arg3: memref<1x1xf32, #tpu.memory_space<vmem>>, %arg4: memref<8x128xf32, #tpu.memory_space<vmem>>) attributes {dimension_semantics = [#tpu.dimension_semantics<arbitrary>], iteration_bounds = array<i64: 1>, scalar_prefetch = 0 : i64, scratch_operands = 1 : i64, tpu.core_type = #tpu.core_type<tc>, window_params = [{transform_indices = @transform_0, window_bounds = array<i64: 16, 128>}, {transform_indices = @transform_1, window_bounds = array<i64: 16, 128>}, {pipeline_mode = #tpu.pipeline_mode<synchronous>, transform_indices = @transform_2, window_bounds = array<i64: 1, 1>}]} {
    %c0_i32 = arith.constant 0 : i32
    %0 = arith.cmpi eq, %arg0, %c0_i32 : i32
    %1 = arith.extui %0 : i1 to i32
    %c0_i32_0 = arith.constant 0 : i32
    %2 = arith.cmpi ne, %1, %c0_i32_0 : i32
    scf.if %2 {
      %cst_13 = arith.constant 0.000000e+00 : f32
      %36 = vector.broadcast %cst_13 : f32 to vector<8x128xf32>
      %c0_14 = arith.constant 0 : index
      %c0_15 = arith.constant 0 : index
      %37 = vector.load %arg4[%c0_14, %c0_15] : memref<8x128xf32, #tpu.memory_space<vmem>>, vector<8x128xf32>
      tpu.vector_store %arg4[%c0_14, %c0_15], %36 {strides = array<i32>} : memref<8x128xf32, #tpu.memory_space<vmem>>, vector<8x128xf32>,
    } else {
    }
    %c0 = arith.constant 0 : index
    %c0_1 = arith.constant 0 : index
    %3 = vector.load %arg1[%c0, %c0_1] : memref<16x128xf32, #tpu.memory_space<vmem>>, vector<16x128xf32>
    %c0_2 = arith.constant 0 : index
    %c0_3 = arith.constant 0 : index
    %4 = vector.load %arg2[%c0_2, %c0_3] : memref<16x128xbf16, #tpu.memory_space<vmem>>, vector<16x128xbf16>
    %5 = arith.extf %4 : vector<16x128xbf16> to vector<16x128xf32>
    %cst = arith.constant 0.000000e+00 : f32
    %6 = vector.broadcast %cst : f32 to vector<16x128xf32>
    %7 = arith.maximumf %3, %6 : vector<16x128xf32>
    %8 = arith.mulf %3, %5 : vector<16x128xf32>
    %9 = arith.subf %7, %8 : vector<16x128xf32>
    %10 = math.absf %3 : vector<16x128xf32>
    %cst_4 = arith.constant 0.000000e+00 : f32
    %11 = vector.broadcast %cst_4 : f32 to vector<16x128xf32>
    %12 = arith.subf %11, %10 : vector<16x128xf32>
    %13 = math.exp %12 : vector<16x128xf32>
    %14 = math.log1p %13 : vector<16x128xf32>
    %15 = arith.addf %9, %14 : vector<16x128xf32>
    %16 = tpu.iota {dimensions = array<i32: 0>} : vector<16x128xi32>
    %17 = tpu.iota {dimensions = array<i32: 1>} : vector<16x128xi32>
    %c16_i32 = arith.constant 16 : i32
    %18 = arith.muli %arg0, %c16_i32 : i32
    %19 = vector.broadcast %18 : i32 to vector<16x128xi32>
    %20 = arith.addi %19, %16 : vector<16x128xi32>
    %c128_i32 = arith.constant 128 : i32
    %21 = vector.broadcast %c128_i32 : i32 to vector<16x128xi32>
    %22 = arith.muli %20, %21 : vector<16x128xi32>
    %23 = arith.addi %22, %17 : vector<16x128xi32>
    %c2048_i32 = arith.constant 2048 : i32
    %24 = vector.broadcast %c2048_i32 : i32 to vector<16x128xi32>
    %25 = arith.cmpi slt, %23, %24 : vector<16x128xi32>
    %cst_5 = arith.constant 0.000000e+00 : f32
    %26 = vector.broadcast %cst_5 : f32 to vector<16x128xf32>
    %27 = arith.select %25, %15, %26 : vector<16x128xi1>, vector<16x128xf32>
    %c0_6 = arith.constant 0 : index
    %c0_7 = arith.constant 0 : index
    %28 = vector.load %arg4[%c0_6, %c0_7] : memref<8x128xf32, #tpu.memory_space<vmem>>, vector<8x128xf32>
    %29 = vector.shape_cast %27 : vector<16x128xf32> to vector<2x8x128xf32>
    %cst_8 = arith.constant dense<0.000000e+00> : vector<8x128xf32>
    %30 = vector.multi_reduction <add>, %29, %cst_8 [0] : vector<2x8x128xf32> to vector<8x128xf32>
    %31 = arith.addf %28, %30 : vector<8x128xf32>
    %c0_9 = arith.constant 0 : index
    %c0_10 = arith.constant 0 : index
    %32 = vector.load %arg4[%c0_9, %c0_10] : memref<8x128xf32, #tpu.memory_space<vmem>>, vector<8x128xf32>
    tpu.vector_store %arg4[%c0_9, %c0_10], %31 {strides = array<i32>} : memref<8x128xf32, #tpu.memory_space<vmem>>, vector<8x128xf32>,
    %c0_i32_11 = arith.constant 0 : i32
    %33 = arith.cmpi eq, %arg0, %c0_i32_11 : i32
    %34 = arith.extui %33 : i1 to i32
    %c0_i32_12 = arith.constant 0 : i32
    %35 = arith.cmpi ne, %34, %c0_i32_12 : i32
    scf.if %35 {
      %c0_13 = arith.constant 0 : index
      %c0_14 = arith.constant 0 : index
      %36 = vector.load %arg4[%c0_13, %c0_14] : memref<8x128xf32, #tpu.memory_space<vmem>>, vector<8x128xf32>
      %cst_15 = arith.constant dense<0.000000e+00> : vector<128xf32>
      %37 = vector.multi_reduction <add>, %36, %cst_15 [0] : vector<8x128xf32> to vector<128xf32>
      %38 = vector.shape_cast %37 : vector<128xf32> to vector<1x128xf32>
      %cst_16 = arith.constant dense<0.000000e+00> : vector<1xf32>
      %39 = vector.multi_reduction <add>, %38, %cst_16 [1] : vector<1x128xf32> to vector<1xf32>
      %40 = vector.shape_cast %39 : vector<1xf32> to vector<1x1xf32>
      %cst_17 = arith.constant 4.8828125E-4 : f32
      %41 = vector.broadcast %cst_17 : f32 to vector<1x1xf32>
      %42 = arith.mulf %40, %41 : vector<1x1xf32>
      %c0_18 = arith.constant 0 : index
      %c0_19 = arith.constant 0 : index
      %43 = vector.load %arg3[%c0_18, %c0_19] : memref<1x1xf32, #tpu.memory_space<vmem>>, vector<1x1xf32>
      tpu.vector_store %arg3[%c0_18, %c0_19], %42 {strides = array<i32>} : memref<1x1xf32, #tpu.memory_space<vmem>>, vector<1x1xf32>,
    } else {
    }
    return
  }
  func.func @transform_0(%arg0: i32) -> (i32, i32) {
    %c0_i32 = arith.constant 0 : i32
    %c0_i32_0 = arith.constant 0 : i32
    return %arg0, %c0_i32 : i32, i32
  }
  func.func @transform_1(%arg0: i32) -> (i32, i32) {
    %c0_i32 = arith.constant 0 : i32
    %c0_i32_0 = arith.constant 0 : i32
    return %arg0, %c0_i32 : i32, i32
  }
  func.func @transform_2(%arg0: i32) -> (i32, i32) {
    %c0_i32 = arith.constant 0 : i32
    %c0_i32_0 = arith.constant 0 : i32
    %c0_i32_1 = arith.constant 0 : i32
    return %c0_i32, %c0_i32_0 : i32, i32
  }
}

</mosaic_0001>

<llo_original>
// kernel: tpu_custom_call.1
$region0: #{tpu_custom_call.1}
  #allocation0 [shape = 'u32[]', space=smem, size = 0x4, offset = 0x4, fixed_abs, tag = 'smem constant byte address 0x4 - core index']
  #allocation1 [shape = 'u32[144,128]{1,0:T(1,128)}', space=vmem, size = 0x12000, scoped, tag = 'internal scratch']
  #allocation2 [shape = 'f32[8,128]{1,0:T(8,128)}', space=vmem, size = 0x1000, scoped, tag = 'scratch operand']
  %s0 = inlined_call_operand.hbm [shape: f32[16,128], index: 0, kind: input, shape index: {}]
  %s1 = inlined_call_operand.hbm [shape: bf16[16,128], index: 1, kind: input, shape index: {}]
  %s2 = inlined_call_operand.hbm [shape: f32[1,1], index: 2, kind: output, shape index: {}]
  %s3 = sld [smem:[#allocation0]]
  $region34: #{tpu_custom_call.1} parent=0
    _
  %s5 = ssub.s32 1, %s3
  %s6 = scalar_select 0, %s5, %s3
  $region1: #{tpu_custom_call.1} parent=0
    #allocation3 [shape = 'u8[8192]{0}', space=vmem, size = 0x2000, scoped, tag = 'input window, operand 0, single buffered']
    #allocation4 [shape = 's32[1]{0}', space=sflag, size = 0x4, scoped, tag = 'scoped memory for tpu_custom_call.1']
    #allocation5 [shape = 's32[1]{0}', space=sflag, size = 0x4, scoped, tag = 'scoped memory for tpu_custom_call.1']
    #allocation6 [shape = 'u8[4096]{0}', space=vmem, size = 0x1000, scoped, tag = 'input window, operand 1, single buffered']
    #allocation7 [shape = 's32[1]{0}', space=sflag, size = 0x4, scoped, tag = 'scoped memory for tpu_custom_call.1']
    #allocation8 [shape = 'u8[512]{0}', space=vmem, size = 0x400, scoped, tag = 'output window, operand 0, single buffered']
    %7 = vsyncpa [#allocation4], 0
    %8 = vsyncpa [#allocation7], 0
    %9 = vsyncpa [#allocation5], 0
    // Predicated region
    $region2: #{tpu_custom_call.1} parent=1 // pred_check
      _
    $region3: #{tpu_custom_call.1} parent=1 // pred_check_branch
      %11 = sbr.rel (0) target = $region5
    $region4: #{tpu_custom_call.1} parent=1 // pred_region
      %s13 = ssub.s32 256, 256
      %14 = vsyncadd [#allocation4], %s13
      %s15 = sshll.u32 [#allocation3], 4
      %s16 = int_to_ptr.vmem [resolvable:$true] %s15
      %21 = dma.hbm_to_vmem [thread:$0]  %s0, 256, %s16, [#allocation4], 128, 128, 8
    $region5: #{tpu_custom_call.1} parent=1 // pred_fallthru
      _
    // Predicated region
    $region6: #{tpu_custom_call.1} parent=1 // pred_check
      _
    $region7: #{tpu_custom_call.1} parent=1 // pred_check_branch
      %23 = sbr.rel (0) target = $region9
    $region8: #{tpu_custom_call.1} parent=1 // pred_region
      %s25 = ssub.s32 128, 128
      %26 = vsyncadd [#allocation7], %s25
      %s27 = sshll.u32 [#allocation6], 4
      %s28 = int_to_ptr.vmem [resolvable:$true] %s27
      %33 = dma.hbm_to_vmem [thread:$0]  %s1, 128, %s28, [#allocation7], 64, 64, 4
    $region9: #{tpu_custom_call.1} parent=1 // pred_fallthru
      _
    // Predicated region
    $region10: #{tpu_custom_call.1} parent=1 // pred_check
      _
    $region11: #{tpu_custom_call.1} parent=1 // pred_check_branch
      %35 = sbr.rel (0) target = $region13
    $region12: #{tpu_custom_call.1} parent=1 // pred_region
      %36 = dma.done [#allocation4], 256
    $region13: #{tpu_custom_call.1} parent=1 // pred_fallthru
      _
    // Predicated region
    $region14: #{tpu_custom_call.1} parent=1 // pred_check
      _
    $region15: #{tpu_custom_call.1} parent=1 // pred_check_branch
      %38 = sbr.rel (0) target = $region17
    $region16: #{tpu_custom_call.1} parent=1 // pred_region
      %39 = dma.done [#allocation7], 128
    $region17: #{tpu_custom_call.1} parent=1 // pred_fallthru
      _
    %p40 = scmp.eq.s32.totalorder 0, 0
    // Predicated region
    $region18: #{tpu_custom_call.1} parent=1 // pred_check
      %p41 = pneg %p40
    $region19: #{tpu_custom_call.1} parent=1 // pred_check_branch
      %43 = sbr.rel (%p41) target = $region21
    $region20: #{tpu_custom_call.1} parent=1 // pred_region
      %44 = vst [vmem:[#allocation2] sm:$0xff] 0.0
    $region21: #{tpu_custom_call.1} parent=1 // pred_fallthru
      _
    %v45 = vld [vmem:[#allocation3] sm:$0xff]
    %v46 = vld [vmem:[#allocation3 + $0x8] sm:$0xff]
    %v47 = vld [vmem:[#allocation6] sm:$0xf]
    %v48 = vld [vmem:[#allocation6 + $0x4] sm:$0xf]
    %v49 = vunpack.c.l.bf16 %v47
    %v50 = vunpack.c.l.bf16 %v48
    %v51 = vmax.f32 %v45, 0.0
    %v52 = vmax.f32 %v46, 0.0
    %v53 = vmul.f32 %v45, %v49
    %v54 = vmul.f32 %v46, %v50
    %v55 = vsub.f32 %v51, %v53
    %v56 = vsub.f32 %v52, %v54
    %v57 = vand.u32 2147483647, %v45
    %v58 = vand.u32 2147483647, %v46
    %v59 = vsub.f32 0.0, %v57
    %v60 = vsub.f32 0.0, %v58
    %v61 = vmul.f32 %v59, 1.442695
    %v62 = vpow.pop %v61
    %v63 = vmul.f32 %v60, 1.442695
    %v64 = vpow.pop %v63
    %v65 = vadd.f32 %v62, 1.0
    %v66 = vlog2.pop %v65
    %v67 = vmul.f32 %v66, 0.6931472
    %v68 = vmul.f32 -0.5, %v62
    %v69 = vadd.f32 %v68, 1.0
    %v70 = vmul.f32 %v69, %v62
    %v71 = vand.u32 2147483647, %v62
    %vm72 = vcmp.lt.f32.partialorder %v71, 0.0004427343
    %v73 = vsel %vm72, %v70, %v67
    %v74 = vadd.f32 %v64, 1.0
    %v75 = vlog2.pop %v74
    %v76 = vmul.f32 %v75, 0.6931472
    %v77 = vmul.f32 -0.5, %v64
    %v78 = vadd.f32 %v77, 1.0
    %v79 = vmul.f32 %v78, %v64
    %v80 = vand.u32 2147483647, %v64
    %vm81 = vcmp.lt.f32.partialorder %v80, 0.0004427343
    %v82 = vsel %vm81, %v79, %v76
    %v83 = vadd.f32 %v55, %v73
    %v84 = vadd.f32 %v56, %v82
    %v85 = vlaneseq
    %v86 = vshrl.u32 %v85, 7
    %v87 = vadd.s32 %v86, 8
    %v88 = vlaneseq
    %v89 = vand.u32 %v88, 127
    %s90 = smul.u32 0, 16
    %v91 = vstv %s90
    %v92 = vadd.s32 %v91, %v86
    %v93 = vadd.s32 %v91, %v87
    %v94 = vmul.u32 %v92, 128
    %v95 = vmul.u32 %v93, 128
    %v96 = vadd.s32 %v94, %v89
    %v97 = vadd.s32 %v95, %v89
    %vm98 = vcmp.lt.s32.totalorder %v96, 2048
    %vm99 = vcmp.lt.s32.totalorder %v97, 2048
    %v100 = vsel %vm98, %v83, 0.0
    %v101 = vsel %vm99, %v84, 0.0
    %v102 = vld [vmem:[#allocation2] sm:$0xff]
    %v103 = vadd.f32 %v100, %v101
    %v104 = vadd.f32 %v102, %v103
    %105 = vst [vmem:[#allocation2] sm:$0xff] %v104
    // Predicated region
    $region22: #{tpu_custom_call.1} parent=1 // pred_check
      %p106 = pneg %p40
    $region23: #{tpu_custom_call.1} parent=1 // pred_check_branch
      %108 = sbr.rel (%p106) target = $region25
    $region24: #{tpu_custom_call.1} parent=1 // pred_region
      %v109 = vld [vmem:[#allocation2] sm:$0xff]
      %v110 = vrot.slane %v109, 4
      %v111 = vadd.f32 %v109, %v110
      %v112 = vrot.slane %v111, 2
      %v113 = vadd.f32 %v111, %v112
      %v114 = vrot.slane %v113, 1
      %v115 = vadd.f32 %v113, %v114
      %116 = vadd.xlane.f32.xlu0 %v115
      %v117 = vpop.xlane.xlu0 %116
      %v118 = vmul.f32 %v117, 0.00048828125
      %vm119 = vcmask 0
      %120 = vst.msk [vmem:[#allocation8] sm:$0x1] %vm119, %v118
    $region25: #{tpu_custom_call.1} parent=1 // pred_fallthru
      _
    // Predicated region
    $region26: #{tpu_custom_call.1} parent=1 // pred_check
      _
    $region27: #{tpu_custom_call.1} parent=1 // pred_check_branch
      %122 = sbr.rel (0) target = $region29
    $region28: #{tpu_custom_call.1} parent=1 // pred_region
      %s124 = ssub.s32 16, 16
      %125 = vsyncadd [#allocation5], %s124
      %s127 = sshll.u32 [#allocation8], 4
      %s128 = int_to_ptr.vmem [resolvable:$true] %s127
      %130 = dma.vmem_to_hbm [thread:$0]  %s128, 16, %s2, [#allocation5]
    $region29: #{tpu_custom_call.1} parent=1 // pred_fallthru
      _
    // Predicated region
    $region30: #{tpu_custom_call.1} parent=1 // pred_check
      _
    $region31: #{tpu_custom_call.1} parent=1 // pred_check_branch
      %132 = sbr.rel (0) target = $region33
    $region32: #{tpu_custom_call.1} parent=1 // pred_region
      %133 = dma.done [#allocation5], 16
    $region33: #{tpu_custom_call.1} parent=1 // pred_fallthru
      _
    %134 = vsyncpa [#allocation4], 1
    %135 = vsyncpa [#allocation7], 1
    %136 = vsyncpa [#allocation5], 1

</llo_original>
